<compile_context>
chip_gen: v6e
topology: v6e:2x2x1
jax: 0.10.0
libtpu: 0.0.40
codegen_flags: <defaults>
</compile_context>

<pallas_src>
import functools

import jax
import jax.numpy as jnp
from jax.experimental import pallas as pl
from jax.experimental.pallas import tpu as pltpu

EPS = 1e-5        # nn.BatchNorm1d default eps
LANE = 128        # TPU lane width
SUBLANE = 8       # TPU sublane width (f32)


def _round_up(v, m):
    return (v + m - 1) // m * m


def _pick_tile(dim_padded, prefs=(512, 256, 128)):
    """Largest preferred tile that evenly divides the padded dim (dim is a
    multiple of 128, so 128 always works)."""
    for t in prefs:
        if dim_padded % t == 0:
            return t
    return dim_padded


# ----------------------------------------------------------------------------
# Kernel
# ----------------------------------------------------------------------------
def _resnet_kernel(x_ref, w1_ref, bn1_ref, w2_ref, bn2_ref, xres_ref,
                   o_ref, acc_ref, *opt_scratch, b_true, eps, use_cache):
    """Grid = (n over inp_dim tiles, k over hid_dim tiles [reduction]).

    x_ref       : (B_p, inp_p)           bf16  full input rows (lin1 operand)
    w1_ref      : (inp_p, tile_h)        bf16  column tile of W1^T
    bn1_ref     : (2, tile_h)            f32   [gamma1; beta1] tile
    w2_ref      : (tile_h, tile_n)       bf16  tile of W2^T
    bn2_ref     : (2, tile_n)            f32   [gamma2; beta2] tile
    xres_ref    : (B_p, tile_n)          f32   residual slice of x
    o_ref       : (B_p, tile_n)          f32   output slice
    acc_ref     : (B_p, tile_n)          f32   lin2 accumulator (VMEM scratch)
    opt_scratch : ((num_k, B_p, tile_h)  bf16  post-BN1 activation cache)  [if use_cache]
    """
    n = pl.program_id(0)
    k = pl.program_id(1)

    @pl.when(k == 0)
    def _init():
        acc_ref[...] = jnp.zeros_like(acc_ref)

    inv_b = 1.0 / b_true
    b_pad = acc_ref.shape[0]
    needs_mask = b_pad > b_true          # static: batch was padded
    if needs_mask:
        row_valid = jax.lax.broadcasted_iota(jnp.int32, (b_pad, 1), 0) < b_true

    def mask_rows(a):
        return jnp.where(row_valid, a, 0.0) if needs_mask else a

    def lin1_bn1_relu():
        # ---- lin1: x @ W1^T (bf16 MXU, f32 accumulate); bias cancelled by BN
        h = jnp.dot(x_ref[...], w1_ref[...], preferred_element_type=jnp.float32)
        # ---- bn1 (training-mode batch stats; padded rows of h are exactly 0,
        #      so the raw feature sums are already over valid rows only)
        mean1 = jnp.sum(h, axis=0, keepdims=True) * inv_b
        c1 = mask_rows(h - mean1)
        var1 = jnp.sum(c1 * c1, axis=0, keepdims=True) * inv_b
        scale1 = bn1_ref[0:1, :] * jax.lax.rsqrt(var1 + eps)   # gamma * rsqrt
        shift1 = bn1_ref[1:2, :] - mean1 * scale1               # beta - mean*scale
        h = jnp.maximum(h * scale1 + shift1, 0.0)               # ReLU
        # padded rows must stay exactly 0 so bn2 batch sums remain exact
        return mask_rows(h).astype(jnp.bfloat16)

    if use_cache:
        h_cache_ref = opt_scratch[0]

        @pl.when(n == 0)
        def _fill_cache():
            h_cache_ref[k] = lin1_bn1_relu()

        h_bf = h_cache_ref[k]
    else:
        h_bf = lin1_bn1_relu()

    # ---- lin2 partial product over this hid tile (K-reduction) -------------
    acc_ref[...] += jnp.dot(h_bf, w2_ref[...], preferred_element_type=jnp.float32)

    # ---- epilogue: bn2 + residual + ReLU, store -----------------------------
    @pl.when(k == pl.num_programs(1) - 1)
    def _epilogue():
        y = acc_ref[...]
        mean2 = jnp.sum(y, axis=0, keepdims=True) * inv_b
        c2 = mask_rows(y - mean2)
        var2 = jnp.sum(c2 * c2, axis=0, keepdims=True) * inv_b
        scale2 = bn2_ref[0:1, :] * jax.lax.rsqrt(var2 + eps)
        shift2 = bn2_ref[1:2, :] - mean2 * scale2
        o_ref[...] = jnp.maximum(y * scale2 + shift2 + xres_ref[...], 0.0)


# ----------------------------------------------------------------------------
# One-time parameter packing (transpose, pad, cast, pack gamma/beta slabs)
# ----------------------------------------------------------------------------
def prepare_params(params):
    hid_dim, inp_dim = params["w1"].shape
    inp_p = _round_up(inp_dim, LANE)
    hid_p = _round_up(hid_dim, LANE)

    w1_t = jnp.zeros((inp_p, hid_p), jnp.bfloat16)
    w1_t = w1_t.at[:inp_dim, :hid_dim].set(params["w1"].T.astype(jnp.bfloat16))
    w2_t = jnp.zeros((hid_p, inp_p), jnp.bfloat16)
    w2_t = w2_t.at[:hid_dim, :inp_dim].set(params["w2"].T.astype(jnp.bfloat16))

    bn1 = jnp.zeros((2, hid_p), jnp.float32)
    bn1 = bn1.at[0, :hid_dim].set(params["gamma1"])
    bn1 = bn1.at[1, :hid_dim].set(params["beta1"])
    bn2 = jnp.zeros((2, inp_p), jnp.float32)
    bn2 = bn2.at[0, :inp_dim].set(params["gamma2"])
    bn2 = bn2.at[1, :inp_dim].set(params["beta2"])

    # NOTE: linear biases b1/b2 are intentionally NOT packed: a bias added
    # immediately before a training-mode BatchNorm is exactly cancelled by the
    # mean subtraction, so dropping it is output-identical.
    return {"w1_t": w1_t, "w2_t": w2_t, "bn1": bn1, "bn2": bn2,
            "inp_dim": inp_dim, "hid_dim": hid_dim}


# ----------------------------------------------------------------------------
# Forward wrapper
# ----------------------------------------------------------------------------
def resnet_forward(x, prepped):
    B, inp_dim = x.shape
    assert inp_dim == prepped["inp_dim"]
    inp_p = prepped["w2_t"].shape[1]
    hid_p = prepped["w1_t"].shape[1]
    B_p = _round_up(max(B, SUBLANE), SUBLANE)

    tile_n = _pick_tile(inp_p)
    tile_h = _pick_tile(hid_p)
    num_n = inp_p // tile_n
    num_k = hid_p // tile_h

    # Cache the post-BN1 activations across output (n) tiles when there is
    # more than one of them: lin1/BN1 then run exactly once instead of num_n
    # times.  The cache relies on the n axis being visited sequentially
    # (n == 0 first), so both grid axes must be "arbitrary" in that case.
    use_cache = num_n > 1

    # Pad activations: rows -> multiple of 8 (zeros, masked in BN stats),
    # features -> multiple of 128 (lane dense). bf16 copy feeds the MXU,
    # f32 copy feeds the residual add.
    x_pad = jnp.zeros((B_p, inp_p), jnp.float32).at[:B, :inp_dim].set(x)
    x_bf = x_pad.astype(jnp.bfloat16)

    if use_cache:
        # After the first n sweep the W1 / bn1 tiles are never read again:
        # freeze their block index for n > 0 so the pipeline's revisit check
        # skips those HBM reads entirely.
        w1_map = lambda n, k: (0, jnp.where(n == 0, k, num_k - 1))
        bn1_map = lambda n, k: (0, jnp.where(n == 0, k, num_k - 1))
        dim_sem = ("arbitrary", "arbitrary")
        extra_scratch = [pltpu.VMEM((num_k, B_p, tile_h), jnp.bfloat16)]
    else:
        w1_map = lambda n, k: (0, k)
        bn1_map = lambda n, k: (0, k)
        dim_sem = ("parallel", "arbitrary")
        extra_scratch = []

    grid_spec = pltpu.PrefetchScalarGridSpec(
        num_scalar_prefetch=0,
        grid=(num_n, num_k),
        in_specs=[
            pl.BlockSpec((B_p, inp_p), lambda n, k: (0, 0)),      # x (bf16), resident
            pl.BlockSpec((inp_p, tile_h), w1_map),                # W1^T tile
            pl.BlockSpec((2, tile_h), bn1_map),                   # gamma1/beta1
            pl.BlockSpec((tile_h, tile_n), lambda n, k: (k, n)),  # W2^T tile
            pl.BlockSpec((2, tile_n), lambda n, k: (0, n)),       # gamma2/beta2
            pl.BlockSpec((B_p, tile_n), lambda n, k: (0, n)),     # x residual slice
        ],
        out_specs=pl.BlockSpec((B_p, tile_n), lambda n, k: (0, n)),
        scratch_shapes=[pltpu.VMEM((B_p, tile_n), jnp.float32)] + extra_scratch,
    )

    out_pad = pl.pallas_call(
        functools.partial(_resnet_kernel, b_true=B, eps=EPS, use_cache=use_cache),
        out_shape=jax.ShapeDtypeStruct((B_p, inp_p), jnp.float32),
        grid_spec=grid_spec,
        compiler_params=pltpu.CompilerParams(
            dimension_semantics=dim_sem,
            vmem_limit_bytes=48 * 1024 * 1024,   # fits v7x's 64 MiB, > v6e default
        ),
    )(x_bf, prepped["w1_t"], prepped["bn1"], prepped["w2_t"],
      prepped["bn2"], x_pad)

    return out_pad[:B, :inp_dim]


# ----------------------------------------------------------------------------
# Init + pure-JAX reference (PyTorch semantics, training-mode BN)
# ----------------------------------------------------------------------------
def init_params(key, inp_dim, hid_dim):
    k1, k2, k3, k4 = jax.random.split(key, 4)
    bound1 = 1.0 / jnp.sqrt(inp_dim)
    bound2 = 1.0 / jnp.sqrt(hid_dim)
    return {
        "w1": jax.random.uniform(k1, (hid_dim, inp_dim), jnp.float32,
                                 -bound1, bound1),
        "b1": jax.random.uniform(k2, (hid_dim,), jnp.float32, -bound1, bound1),
        "gamma1": jnp.ones((hid_dim,), jnp.float32),
        "beta1": jnp.zeros((hid_dim,), jnp.float32),
        "w2": jax.random.uniform(k3, (inp_dim, hid_dim), jnp.float32,
                                 -bound2, bound2),
        "b2": jax.random.uniform(k4, (inp_dim,), jnp.float32, -bound2, bound2),
        "gamma2": jnp.ones((inp_dim,), jnp.float32),
        "beta2": jnp.zeros((inp_dim,), jnp.float32),
    }


def resnet_reference(x, params):
    h = x @ params["w1"].T + params["b1"]
    m, v = jnp.mean(h, 0), jnp.var(h, 0)
    h = (h - m) / jnp.sqrt(v + EPS) * params["gamma1"] + params["beta1"]
    h = jnp.maximum(h, 0.0)
    y = h @ params["w2"].T + params["b2"]
    m2, v2 = jnp.mean(y, 0), jnp.var(y, 0)
    y = (y - m2) / jnp.sqrt(v2 + EPS) * params["gamma2"] + params["beta2"]
    return jnp.maximum(y + x, 0.0)


def _run_case(key, B, inp_dim, hid_dim):
    kx, kp = jax.random.split(key)
    x = jax.random.normal(kx, (B, inp_dim), jnp.float32)
    params = init_params(kp, inp_dim, hid_dim)
    prepped = prepare_params(params)
    out = jax.block_until_ready(resnet_forward(x, prepped))
    ref = resnet_reference(x, params)
    assert out.shape == (B, inp_dim)
    assert jnp.allclose(out, ref, atol=5e-2, rtol=5e-2), \
        f"max err {jnp.max(jnp.abs(out - ref))} at shape B={B} inp={inp_dim} hid={hid_dim}"


if __name__ == "__main__":
    key = jax.random.PRNGKey(0)
    k1, k2, k3 = jax.random.split(key, 3)

    # --- Test 1: the module's toy shapes (single grid step) -----------------
    _run_case(k1, B=8, inp_dim=16, hid_dim=32)

    # --- Test 2: K-accumulation grid + batch/feature padding ----------------
    # pads to B=24, inp=256 (1 N tile), hid=384 (3 K tiles)
    _run_case(k2, B=20, inp_dim=192, hid_dim=320)

    # --- Test 3: multi N-tile path (activation cache + frozen W1 index map) -
    # inp=384 -> 3 N tiles of 128, hid=384 -> 3 K tiles of 128
    _run_case(k3, B=16, inp_dim=384, hid_dim=384)

    print("KERNEL_OK")
</pallas_src>

<mosaic_0001>
module attributes {stable_mosaic.version = 11 : i64} {
  func.func @_resnet_kernel(%arg0: i32, %arg1: i32, %arg2: memref<8x128xbf16, #tpu.memory_space<vmem>>, %arg3: memref<128x128xbf16, #tpu.memory_space<vmem>>, %arg4: memref<2x128xf32, #tpu.memory_space<vmem>>, %arg5: memref<128x128xbf16, #tpu.memory_space<vmem>>, %arg6: memref<2x128xf32, #tpu.memory_space<vmem>>, %arg7: memref<8x128xf32, #tpu.memory_space<vmem>>, %arg8: memref<8x128xf32, #tpu.memory_space<vmem>>, %arg9: memref<8x128xf32, #tpu.memory_space<vmem>>) attributes {dimension_semantics = [#tpu.dimension_semantics<parallel>, #tpu.dimension_semantics<arbitrary>], iteration_bounds = array<i64: 1, 1>, scalar_prefetch = 0 : i64, scratch_operands = 1 : i64, tpu.core_type = #tpu.core_type<tc>, window_params = [{pipeline_mode = #tpu.pipeline_mode<synchronous>, transform_indices = @transform_0, window_bounds = array<i64: 8, 128>}, {transform_indices = @transform_1, window_bounds = array<i64: 128, 128>}, {transform_indices = @transform_2, window_bounds = array<i64: 2, 128>}, {transform_indices = @transform_3, window_bounds = array<i64: 128, 128>}, {transform_indices = @transform_4, window_bounds = array<i64: 2, 128>}, {transform_indices = @transform_5, window_bounds = array<i64: 8, 128>}, {transform_indices = @transform_6, window_bounds = array<i64: 8, 128>}]} {
    %c0_i32 = arith.constant 0 : i32
    %0 = arith.cmpi eq, %arg1, %c0_i32 : i32
    %1 = arith.extui %0 : i1 to i32
    %c0_i32_0 = arith.constant 0 : i32
    %2 = arith.cmpi ne, %1, %c0_i32_0 : i32
    scf.if %2 {
      %cst_22 = arith.constant 0.000000e+00 : f32
      %40 = vector.broadcast %cst_22 : f32 to vector<8x128xf32>
      %c0_23 = arith.constant 0 : index
      %c0_24 = arith.constant 0 : index
      %41 = vector.load %arg9[%c0_23, %c0_24] : memref<8x128xf32, #tpu.memory_space<vmem>>, vector<8x128xf32>
      tpu.vector_store %arg9[%c0_23, %c0_24], %40 {strides = array<i32>} : memref<8x128xf32, #tpu.memory_space<vmem>>, vector<8x128xf32>,
    } else {
    }
    %c0 = arith.constant 0 : index
    %c0_1 = arith.constant 0 : index
    %3 = vector.load %arg2[%c0, %c0_1] : memref<8x128xbf16, #tpu.memory_space<vmem>>, vector<8x128xbf16>
    %c0_2 = arith.constant 0 : index
    %c0_3 = arith.constant 0 : index
    %4 = vector.load %arg3[%c0_2, %c0_3] : memref<128x128xbf16, #tpu.memory_space<vmem>>, vector<128x128xbf16>
    %cst = arith.constant dense<0.000000e+00> : vector<8x128xf32>
    %5 = tpu.matmul %3, %4, %cst {dimension_numbers = #tpu.dot_dimension_numbers<[1], [0], [0], [1], [0, 0, 1, 1], [], []>} : vector<8x128xbf16>, vector<128x128xbf16>, vector<8x128xf32> -> vector<8x128xf32>
    %cst_4 = arith.constant dense<0.000000e+00> : vector<128xf32>
    %6 = vector.multi_reduction <add>, %5, %cst_4 [0] : vector<8x128xf32> to vector<128xf32>
    %7 = vector.shape_cast %6 : vector<128xf32> to vector<1x128xf32>
    %cst_5 = arith.constant 1.250000e-01 : f32
    %8 = vector.broadcast %cst_5 : f32 to vector<1x128xf32>
    %9 = arith.mulf %7, %8 : vector<1x128xf32>
    %10 = vector.broadcast %9 : vector<1x128xf32> to vector<8x128xf32>
    %11 = arith.subf %5, %10 : vector<8x128xf32>
    %12 = arith.mulf %11, %11 : vector<8x128xf32>
    %cst_6 = arith.constant dense<0.000000e+00> : vector<128xf32>
    %13 = vector.multi_reduction <add>, %12, %cst_6 [0] : vector<8x128xf32> to vector<128xf32>
    %14 = vector.shape_cast %13 : vector<128xf32> to vector<1x128xf32>
    %cst_7 = arith.constant 1.250000e-01 : f32
    %15 = vector.broadcast %cst_7 : f32 to vector<1x128xf32>
    %16 = arith.mulf %14, %15 : vector<1x128xf32>
    %c0_8 = arith.constant 0 : index
    %c0_9 = arith.constant 0 : index
    %17 = vector.load %arg4[%c0_8, %c0_9] : memref<2x128xf32, #tpu.memory_space<vmem>>, vector<1x128xf32>
    %cst_10 = arith.constant 9.99999974E-6 : f32
    %18 = vector.broadcast %cst_10 : f32 to vector<1x128xf32>
    %19 = arith.addf %16, %18 : vector<1x128xf32>
    %20 = math.rsqrt %19 : vector<1x128xf32>
    %21 = arith.mulf %17, %20 : vector<1x128xf32>
    %c1 = arith.constant 1 : index
    %c0_11 = arith.constant 0 : index
    %22 = vector.load %arg4[%c1, %c0_11] : memref<2x128xf32, #tpu.memory_space<vmem>>, vector<1x128xf32>
    %23 = arith.mulf %9, %21 : vector<1x128xf32>
    %24 = arith.subf %22, %23 : vector<1x128xf32>
    %25 = vector.broadcast %21 : vector<1x128xf32> to vector<8x128xf32>
    %26 = arith.mulf %5, %25 : vector<8x128xf32>
    %27 = vector.broadcast %24 : vector<1x128xf32> to vector<8x128xf32>
    %28 = arith.addf %26, %27 : vector<8x128xf32>
    %cst_12 = arith.constant 0.000000e+00 : f32
    %29 = vector.broadcast %cst_12 : f32 to vector<8x128xf32>
    %30 = arith.maximumf %28, %29 : vector<8x128xf32>
    %31 = arith.truncf %30 : vector<8x128xf32> to vector<8x128xbf16>
    %c0_13 = arith.constant 0 : index
    %c0_14 = arith.constant 0 : index
    %32 = vector.load %arg9[%c0_13, %c0_14] : memref<8x128xf32, #tpu.memory_space<vmem>>, vector<8x128xf32>
    %c0_15 = arith.constant 0 : index
    %c0_16 = arith.constant 0 : index
    %33 = vector.load %arg5[%c0_15, %c0_16] : memref<128x128xbf16, #tpu.memory_space<vmem>>, vector<128x128xbf16>
    %cst_17 = arith.constant dense<0.000000e+00> : vector<8x128xf32>
    %34 = tpu.matmul %31, %33, %cst_17 {dimension_numbers = #tpu.dot_dimension_numbers<[1], [0], [0], [1], [0, 0, 1, 1], [], []>} : vector<8x128xbf16>, vector<128x128xbf16>, vector<8x128xf32> -> vector<8x128xf32>
    %35 = arith.addf %32, %34 : vector<8x128xf32>
    %c0_18 = arith.constant 0 : index
    %c0_19 = arith.constant 0 : index
    %36 = vector.load %arg9[%c0_18, %c0_19] : memref<8x128xf32, #tpu.memory_space<vmem>>, vector<8x128xf32>
    tpu.vector_store %arg9[%c0_18, %c0_19], %35 {strides = array<i32>} : memref<8x128xf32, #tpu.memory_space<vmem>>, vector<8x128xf32>,
    %c0_i32_20 = arith.constant 0 : i32
    %37 = arith.cmpi eq, %arg1, %c0_i32_20 : i32
    %38 = arith.extui %37 : i1 to i32
    %c0_i32_21 = arith.constant 0 : i32
    %39 = arith.cmpi ne, %38, %c0_i32_21 : i32
    scf.if %39 {
      %c0_22 = arith.constant 0 : index
      %c0_23 = arith.constant 0 : index
      %40 = vector.load %arg9[%c0_22, %c0_23] : memref<8x128xf32, #tpu.memory_space<vmem>>, vector<8x128xf32>
      %cst_24 = arith.constant dense<0.000000e+00> : vector<128xf32>
      %41 = vector.multi_reduction <add>, %40, %cst_24 [0] : vector<8x128xf32> to vector<128xf32>
      %42 = vector.shape_cast %41 : vector<128xf32> to vector<1x128xf32>
      %cst_25 = arith.constant 1.250000e-01 : f32
      %43 = vector.broadcast %cst_25 : f32 to vector<1x128xf32>
      %44 = arith.mulf %42, %43 : vector<1x128xf32>
      %45 = vector.broadcast %44 : vector<1x128xf32> to vector<8x128xf32>
      %46 = arith.subf %40, %45 : vector<8x128xf32>
      %47 = arith.mulf %46, %46 : vector<8x128xf32>
      %cst_26 = arith.constant dense<0.000000e+00> : vector<128xf32>
      %48 = vector.multi_reduction <add>, %47, %cst_26 [0] : vector<8x128xf32> to vector<128xf32>
      %49 = vector.shape_cast %48 : vector<128xf32> to vector<1x128xf32>
      %cst_27 = arith.constant 1.250000e-01 : f32
      %50 = vector.broadcast %cst_27 : f32 to vector<1x128xf32>
      %51 = arith.mulf %49, %50 : vector<1x128xf32>
      %c0_28 = arith.constant 0 : index
      %c0_29 = arith.constant 0 : index
      %52 = vector.load %arg6[%c0_28, %c0_29] : memref<2x128xf32, #tpu.memory_space<vmem>>, vector<1x128xf32>
      %cst_30 = arith.constant 9.99999974E-6 : f32
      %53 = vector.broadcast %cst_30 : f32 to vector<1x128xf32>
      %54 = arith.addf %51, %53 : vector<1x128xf32>
      %55 = math.rsqrt %54 : vector<1x128xf32>
      %56 = arith.mulf %52, %55 : vector<1x128xf32>
      %c1_31 = arith.constant 1 : index
      %c0_32 = arith.constant 0 : index
      %57 = vector.load %arg6[%c1_31, %c0_32] : memref<2x128xf32, #tpu.memory_space<vmem>>, vector<1x128xf32>
      %58 = arith.mulf %44, %56 : vector<1x128xf32>
      %59 = arith.subf %57, %58 : vector<1x128xf32>
      %60 = vector.broadcast %56 : vector<1x128xf32> to vector<8x128xf32>
      %61 = arith.mulf %40, %60 : vector<8x128xf32>
      %62 = vector.broadcast %59 : vector<1x128xf32> to vector<8x128xf32>
      %63 = arith.addf %61, %62 : vector<8x128xf32>
      %c0_33 = arith.constant 0 : index
      %c0_34 = arith.constant 0 : index
      %64 = vector.load %arg7[%c0_33, %c0_34] : memref<8x128xf32, #tpu.memory_space<vmem>>, vector<8x128xf32>
      %65 = arith.addf %63, %64 : vector<8x128xf32>
      %cst_35 = arith.constant 0.000000e+00 : f32
      %66 = vector.broadcast %cst_35 : f32 to vector<8x128xf32>
      %67 = arith.maximumf %65, %66 : vector<8x128xf32>
      %c0_36 = arith.constant 0 : index
      %c0_37 = arith.constant 0 : index
      %68 = vector.load %arg8[%c0_36, %c0_37] : memref<8x128xf32, #tpu.memory_space<vmem>>, vector<8x128xf32>
      tpu.vector_store %arg8[%c0_36, %c0_37], %67 {strides = array<i32>} : memref<8x128xf32, #tpu.memory_space<vmem>>, vector<8x128xf32>,
    } else {
    }
    return
  }
  func.func @transform_0(%arg0: i32, %arg1: i32) -> (i32, i32) {
    %c0_i32 = arith.constant 0 : i32
    %c0_i32_0 = arith.constant 0 : i32
    %c0_i32_1 = arith.constant 0 : i32
    return %c0_i32, %c0_i32_0 : i32, i32
  }
  func.func @transform_1(%arg0: i32, %arg1: i32) -> (i32, i32) {
    %c0_i32 = arith.constant 0 : i32
    %c0_i32_0 = arith.constant 0 : i32
    return %c0_i32, %arg1 : i32, i32
  }
  func.func @transform_2(%arg0: i32, %arg1: i32) -> (i32, i32) {
    %c0_i32 = arith.constant 0 : i32
    %c0_i32_0 = arith.constant 0 : i32
    return %c0_i32, %arg1 : i32, i32
  }
  func.func @transform_3(%arg0: i32, %arg1: i32) -> (i32, i32) {
    %c0_i32 = arith.constant 0 : i32
    return %arg1, %arg0 : i32, i32
  }
  func.func @transform_4(%arg0: i32, %arg1: i32) -> (i32, i32) {
    %c0_i32 = arith.constant 0 : i32
    %c0_i32_0 = arith.constant 0 : i32
    return %c0_i32, %arg0 : i32, i32
  }
  func.func @transform_5(%arg0: i32, %arg1: i32) -> (i32, i32) {
    %c0_i32 = arith.constant 0 : i32
    %c0_i32_0 = arith.constant 0 : i32
    return %c0_i32, %arg0 : i32, i32
  }
  func.func @transform_6(%arg0: i32, %arg1: i32) -> (i32, i32) {
    %c0_i32 = arith.constant 0 : i32
    %c0_i32_0 = arith.constant 0 : i32
    return %c0_i32, %arg0 : i32, i32
  }
}

</mosaic_0001>

<llo_original>
// kernel: tpu_custom_call.1
$region0: #{tpu_custom_call.1}
  #allocation0 [shape = 'u32[]', space=smem, size = 0x4, offset = 0x4, fixed_abs, tag = 'smem constant byte address 0x4 - core index']
  #allocation1 [shape = 'u32[144,128]{1,0:T(1,128)}', space=vmem, size = 0x12000, scoped, tag = 'internal scratch']
  #allocation2 [shape = 'f32[8,128]{1,0:T(8,128)}', space=vmem, size = 0x1000, scoped, tag = 'scratch operand']
  %s0 = inlined_call_operand.hbm [shape: bf16[8,128], index: 0, kind: input, shape index: {}]
  %s1 = inlined_call_operand.hbm [shape: bf16[128,128], index: 1, kind: input, shape index: {}]
  %s2 = inlined_call_operand.hbm [shape: f32[2,128], index: 2, kind: input, shape index: {}]
  %s3 = inlined_call_operand.hbm [shape: bf16[128,128], index: 3, kind: input, shape index: {}]
  %s4 = inlined_call_operand.hbm [shape: f32[2,128], index: 4, kind: input, shape index: {}]
  %s5 = inlined_call_operand.vmem [shape: f32[8,128], index: 5, kind: input, shape index: {}]
  %s6 = inlined_call_operand.hbm [shape: f32[8,128], index: 6, kind: output, shape index: {}]
  %s7 = sld [smem:[#allocation0]]
  $region62: #{tpu_custom_call.1} parent=0
    _
  %s9 = ssub.s32 1, %s7
  %s10 = scalar_select 0, %s9, %s7
  $region1: #{tpu_custom_call.1} parent=0
    #allocation3 [shape = 'u8[2048]{0}', space=vmem, size = 0x800, scoped, tag = 'input window, operand 0, single buffered']
    #allocation4 [shape = 's32[1]{0}', space=sflag, size = 0x4, scoped, tag = 'scoped memory for tpu_custom_call.1']
    #allocation5 [shape = 's32[1]{0}', space=sflag, size = 0x4, scoped, tag = 'scoped memory for tpu_custom_call.1']
    #allocation6 [shape = 'u8[32768]{0}', space=vmem, size = 0x8000, scoped, tag = 'input window, operand 1, single buffered']
    #allocation7 [shape = 's32[1]{0}', space=sflag, size = 0x4, scoped, tag = 'scoped memory for tpu_custom_call.1']
    #allocation8 [shape = 'u8[1024]{0}', space=vmem, size = 0x400, scoped, tag = 'input window, operand 2, single buffered']
    #allocation9 [shape = 'u8[32768]{0}', space=vmem, size = 0x8000, scoped, tag = 'input window, operand 3, single buffered']
    #allocation10 [shape = 's32[1]{0}', space=sflag, size = 0x4, scoped, tag = 'scoped memory for tpu_custom_call.1']
    #allocation11 [shape = 'u8[1024]{0}', space=vmem, size = 0x400, scoped, tag = 'input window, operand 4, single buffered']
    #allocation12 [shape = 'u8[4096]{0}', space=vmem, size = 0x1000, scoped, tag = 'output window, operand 0, single buffered']
    %11 = vsyncpa [#allocation4], 0
    %12 = vsyncpa [#allocation7], 0
    %13 = vsyncpa [#allocation10], 0
    %14 = vsyncpa [#allocation5], 0
    // Predicated region
    $region2: #{tpu_custom_call.1} parent=1 // pred_check
      _
    $region3: #{tpu_custom_call.1} parent=1 // pred_check_branch
      %16 = sbr.rel (0) target = $region5
    $region4: #{tpu_custom_call.1} parent=1 // pred_region
      %s18 = ssub.s32 64, 64
      %19 = vsyncadd [#allocation4], %s18
      %s21 = sshll.u32 [#allocation3], 4
      %s22 = int_to_ptr.vmem [resolvable:$true] %s21
      %24 = dma.hbm_to_vmem [thread:$0]  %s0, 64, %s22, [#allocation4]
    $region5: #{tpu_custom_call.1} parent=1 // pred_fallthru
      _
    // Predicated region
    $region6: #{tpu_custom_call.1} parent=1 // pred_check
      _
    $region7: #{tpu_custom_call.1} parent=1 // pred_check_branch
      %26 = sbr.rel (0) target = $region9
    $region8: #{tpu_custom_call.1} parent=1 // pred_region
      %s28 = ssub.s32 1024, 1024
      %29 = vsyncadd [#allocation7], %s28
      %s30 = sshll.u32 [#allocation6], 4
      %s31 = int_to_ptr.vmem [resolvable:$true] %s30
      %36 = dma.hbm_to_vmem [thread:$0]  %s1, 1024, %s31, [#allocation7], 64, 64, 4
    $region9: #{tpu_custom_call.1} parent=1 // pred_fallthru
      _
    // Predicated region
    $region10: #{tpu_custom_call.1} parent=1 // pred_check
      _
    $region11: #{tpu_custom_call.1} parent=1 // pred_check_branch
      %38 = sbr.rel (0) target = $region13
    $region12: #{tpu_custom_call.1} parent=1 // pred_region
      %s40 = ssub.s32 32, 32
      %41 = vsyncadd [#allocation7], %s40
      %s43 = sshll.u32 [#allocation8], 4
      %s44 = int_to_ptr.vmem [resolvable:$true] %s43
      %46 = dma.hbm_to_vmem [thread:$0]  %s2, 32, %s44, [#allocation7]
    $region13: #{tpu_custom_call.1} parent=1 // pred_fallthru
      _
    // Predicated region
    $region14: #{tpu_custom_call.1} parent=1 // pred_check
      _
    $region15: #{tpu_custom_call.1} parent=1 // pred_check_branch
      %48 = sbr.rel (0) target = $region17
    $region16: #{tpu_custom_call.1} parent=1 // pred_region
      %s50 = ssub.s32 1024, 1024
      %51 = vsyncadd [#allocation10], %s50
      %s52 = sshll.u32 [#allocation9], 4
      %s53 = int_to_ptr.vmem [resolvable:$true] %s52
      %58 = dma.hbm_to_vmem [thread:$0]  %s3, 1024, %s53, [#allocation10], 64, 64, 4
    $region17: #{tpu_custom_call.1} parent=1 // pred_fallthru
      _
    // Predicated region
    $region18: #{tpu_custom_call.1} parent=1 // pred_check
      _
    $region19: #{tpu_custom_call.1} parent=1 // pred_check_branch
      %60 = sbr.rel (0) target = $region21
    $region20: #{tpu_custom_call.1} parent=1 // pred_region
      %s62 = ssub.s32 32, 32
      %63 = vsyncadd [#allocation10], %s62
      %s65 = sshll.u32 [#allocation11], 4
      %s66 = int_to_ptr.vmem [resolvable:$true] %s65
      %68 = dma.hbm_to_vmem [thread:$0]  %s4, 32, %s66, [#allocation10]
    $region21: #{tpu_custom_call.1} parent=1 // pred_fallthru
      _
    // Predicated region
    $region22: #{tpu_custom_call.1} parent=1 // pred_check
      _
    $region23: #{tpu_custom_call.1} parent=1 // pred_check_branch
      %70 = sbr.rel (0) target = $region25
    $region24: #{tpu_custom_call.1} parent=1 // pred_region
      _
    $region25: #{tpu_custom_call.1} parent=1 // pred_fallthru
      _
    // Predicated region
    $region26: #{tpu_custom_call.1} parent=1 // pred_check
      _
    $region27: #{tpu_custom_call.1} parent=1 // pred_check_branch
      %72 = sbr.rel (0) target = $region29
    $region28: #{tpu_custom_call.1} parent=1 // pred_region
      %73 = dma.done [#allocation4], 64
    $region29: #{tpu_custom_call.1} parent=1 // pred_fallthru
      _
    // Predicated region
    $region30: #{tpu_custom_call.1} parent=1 // pred_check
      _
    $region31: #{tpu_custom_call.1} parent=1 // pred_check_branch
      %75 = sbr.rel (0) target = $region33
    $region32: #{tpu_custom_call.1} parent=1 // pred_region
      %76 = dma.done [#allocation7], 1024
    $region33: #{tpu_custom_call.1} parent=1 // pred_fallthru
      _
    // Predicated region
    $region34: #{tpu_custom_call.1} parent=1 // pred_check
      _
    $region35: #{tpu_custom_call.1} parent=1 // pred_check_branch
      %78 = sbr.rel (0) target = $region37
    $region36: #{tpu_custom_call.1} parent=1 // pred_region
      %79 = dma.done [#allocation7], 32
    $region37: #{tpu_custom_call.1} parent=1 // pred_fallthru
      _
    // Predicated region
    $region38: #{tpu_custom_call.1} parent=1 // pred_check
      _
    $region39: #{tpu_custom_call.1} parent=1 // pred_check_branch
      %81 = sbr.rel (0) target = $region41
    $region40: #{tpu_custom_call.1} parent=1 // pred_region
      %82 = dma.done [#allocation10], 1024
    $region41: #{tpu_custom_call.1} parent=1 // pred_fallthru
      _
    // Predicated region
    $region42: #{tpu_custom_call.1} parent=1 // pred_check
      _
    $region43: #{tpu_custom_call.1} parent=1 // pred_check_branch
      %84 = sbr.rel (0) target = $region45
    $region44: #{tpu_custom_call.1} parent=1 // pred_region
      %85 = dma.done [#allocation10], 32
    $region45: #{tpu_custom_call.1} parent=1 // pred_fallthru
      _
    %p87 = scmp.eq.s32.totalorder 0, 0
    // Predicated region
    $region46: #{tpu_custom_call.1} parent=1 // pred_check
      %p88 = pneg %p87
    $region47: #{tpu_custom_call.1} parent=1 // pred_check_branch
      %90 = sbr.rel (%p88) target = $region49
    $region48: #{tpu_custom_call.1} parent=1 // pred_region
      %91 = vst [vmem:[#allocation2] sm:$0xff] 0.0
    $region49: #{tpu_custom_call.1} parent=1 // pred_fallthru
      _
    %v92 = vld [vmem:[#allocation3] sm:$0xf]
    %v93 = vld [vmem:[#allocation6] sm:$0xf]
    %v94 = vld [vmem:[#allocation6 + $0x4] sm:$0xf]
    %v95 = vld [vmem:[#allocation6 + $0x8] sm:$0xf]
    %v96 = vld [vmem:[#allocation6 + $0xc] sm:$0xf]
    %v97 = vld [vmem:[#allocation6 + $0x10] sm:$0xf]
    %v98 = vld [vmem:[#allocation6 + $0x14] sm:$0xf]
    %v99 = vld [vmem:[#allocation6 + $0x18] sm:$0xf]
    %v100 = vld [vmem:[#allocation6 + $0x1c] sm:$0xf]
    %v101 = vld [vmem:[#allocation6 + $0x20] sm:$0xf]
    %v102 = vld [vmem:[#allocation6 + $0x24] sm:$0xf]
    %v103 = vld [vmem:[#allocation6 + $0x28] sm:$0xf]
    %v104 = vld [vmem:[#allocation6 + $0x2c] sm:$0xf]
    %v105 = vld [vmem:[#allocation6 + $0x30] sm:$0xf]
    %v106 = vld [vmem:[#allocation6 + $0x34] sm:$0xf]
    %v107 = vld [vmem:[#allocation6 + $0x38] sm:$0xf]
    %v108 = vld [vmem:[#allocation6 + $0x3c] sm:$0xf]
    %v125 = vunpack.c.l.b16 %v93
    %v126 = vunpack.c.l.b16 %v94
    %v127 = vunpack.c.l.b16 %v95
    %v128 = vunpack.c.l.b16 %v96
    %v129 = vunpack.c.l.b16 %v97
    %v130 = vunpack.c.l.b16 %v98
    %v131 = vunpack.c.l.b16 %v99
    %v132 = vunpack.c.l.b16 %v100
    %v133 = vunpack.c.l.b16 %v101
    %v134 = vunpack.c.l.b16 %v102
    %v135 = vunpack.c.l.b16 %v103
    %v136 = vunpack.c.l.b16 %v104
    %v137 = vunpack.c.l.b16 %v105
    %v138 = vunpack.c.l.b16 %v106
    %v139 = vunpack.c.l.b16 %v107
    %v140 = vunpack.c.l.b16 %v108
    %v141 = vpack.c.b16 %v126, %v125
    %v142 = vpack.c.b16 %v128, %v127
    %v143 = vpack.c.b16 %v130, %v129
    %v144 = vpack.c.b16 %v132, %v131
    %v145 = vpack.c.b16 %v134, %v133
    %v146 = vpack.c.b16 %v136, %v135
    %v147 = vpack.c.b16 %v138, %v137
    %v148 = vpack.c.b16 %v140, %v139
    %157 = vmatprep.subr.bf16.mxu0 0
    %158 = vmatpush1.bf16.msra.mxu0 %v148
    %159 = vmatprep.subr.bf16.mxu0 0
    %160 = vmatpush1.bf16.msra.mxu0 %v147
    %161 = vmatprep.subr.bf16.mxu0 0
    %162 = vmatpush1.bf16.msra.mxu0 %v146
    %163 = vmatprep.subr.bf16.mxu0 0
    %164 = vmatpush1.bf16.msra.mxu0 %v145
    %165 = vmatprep.subr.bf16.mxu0 0
    %166 = vmatpush1.bf16.msra.mxu0 %v144
    %167 = vmatprep.subr.bf16.mxu0 0
    %168 = vmatpush1.bf16.msra.mxu0 %v143
    %169 = vmatprep.subr.bf16.mxu0 0
    %170 = vmatpush1.bf16.msra.mxu0 %v142
    %171 = vmatprep.subr.bf16.mxu0 0
    %172 = vmatpush1.bf16.msra.mxu0 %v141
    %173 = vmatprep.subr.bf16.mxu0 0
    %174 = vmatpush2.bf16.msra.mxu0 0
    %175 = vmatprep.subr.bf16.mxu0 0
    %176 = vmatpush2.bf16.msra.mxu0 0
    %177 = vmatprep.subr.bf16.mxu0 0
    %178 = vmatpush2.bf16.msra.mxu0 0
    %179 = vmatprep.subr.bf16.mxu0 0
    %180 = vmatpush2.bf16.msra.mxu0 0
    %181 = vmatprep.subr.bf16.mxu0 0
    %182 = vmatpush2.bf16.msra.mxu0 0
    %183 = vmatprep.subr.bf16.mxu0 0
    %184 = vmatpush2.bf16.msra.mxu0 0
    %185 = vmatprep.subr.bf16.mxu0 0
    %186 = vmatpush2.bf16.msra.mxu0 0
    %187 = vmatprep.subr.bf16.mxu0 0
    %188 = vmatpush2.bf16.msra.mxu0 0
    %189 = vmatprep.mubr.bf16.mxu0 0
    %190 = vmatmul.mubr.bf16.gmra.mxu0 %v92
    %v191 = vpop.f32.mrf.mxu0
    %v192 = vadd.f32 0.0, %v191
    %v193 = vpop.f32.mrf.mxu0
    %v194 = vpop.f32.mrf.mxu0
    %v195 = vpop.f32.mrf.mxu0
    %196 = vdwg.mxu0
    %v197 = vrot.slane %v192, 4
    %v198 = vadd.f32 %v192, %v197
    %v199 = vrot.slane %v198, 2
    %v200 = vadd.f32 %v198, %v199
    %v201 = vrot.slane %v200, 1
    %v202 = vadd.f32 %v200, %v201
    %v203 = vmul.f32 %v202, 0.125
    %v204 = vsub.f32 %v192, %v203
    %v205 = vmul.f32 %v204, %v204
    %v206 = vrot.slane %v205, 4
    %v207 = vadd.f32 %v205, %v206
    %v208 = vrot.slane %v207, 2
    %v209 = vadd.f32 %v207, %v208
    %v210 = vrot.slane %v209, 1
    %v211 = vadd.f32 %v209, %v210
    %v212 = vmul.f32 %v211, 0.125
    %v213 = vld [vmem:[#allocation8] sm:$0x1]
    %v214 = vadd.f32 %v212, 1e-05
    %v215 = vrsqrt.pop %v214
    %v216 = vmul.f32 %v213, %v215
    %v217 = vld [vmem:[#allocation8 + $0x1] sm:$0x1]
    %v218 = vmul.f32 %v203, %v216
    %v219 = vsub.f32 %v217, %v218
    %v220 = vlaneseq
    %v221 = vshrl.u32 %v220, 7
    %v222 = vsub.s32 0, %v221
    %v223 = vrot.slane %v216, %v222
    %v224 = vmul.f32 %v192, %v223
    %v225 = vlaneseq
    %v226 = vshrl.u32 %v225, 7
    %v227 = vsub.s32 0, %v226
    %v228 = vrot.slane %v219, %v227
    %v229 = vadd.f32 %v224, %v228
    %v230 = vmax.f32 %v229, 0.0
    %v231 = vpack.c.bf16 %v230, %v230
    %v232 = vld [vmem:[#allocation2] sm:$0xff]
    %v233 = vld [vmem:[#allocation9] sm:$0xf]
    %v234 = vld [vmem:[#allocation9 + $0x4] sm:$0xf]
    %v235 = vld [vmem:[#allocation9 + $0x8] sm:$0xf]
    %v236 = vld [vmem:[#allocation9 + $0xc] sm:$0xf]
    %v237 = vld [vmem:[#allocation9 + $0x10] sm:$0xf]
    %v238 = vld [vmem:[#allocation9 + $0x14] sm:$0xf]
    %v239 = vld [vmem:[#allocation9 + $0x18] sm:$0xf]
    %v240 = vld [vmem:[#allocation9 + $0x1c] sm:$0xf]
    %v241 = vld [vmem:[#allocation9 + $0x20] sm:$0xf]
    %v242 = vld [vmem:[#allocation9 + $0x24] sm:$0xf]
    %v243 = vld [vmem:[#allocation9 + $0x28] sm:$0xf]
    %v244 = vld [vmem:[#allocation9 + $0x2c] sm:$0xf]
    %v245 = vld [vmem:[#allocation9 + $0x30] sm:$0xf]
    %v246 = vld [vmem:[#allocation9 + $0x34] sm:$0xf]
    %v247 = vld [vmem:[#allocation9 + $0x38] sm:$0xf]
    %v248 = vld [vmem:[#allocation9 + $0x3c] sm:$0xf]
    %v265 = vunpack.c.l.b16 %v233
    %v266 = vunpack.c.l.b16 %v234
    %v267 = vunpack.c.l.b16 %v235
    %v268 = vunpack.c.l.b16 %v236
    %v269 = vunpack.c.l.b16 %v237
    %v270 = vunpack.c.l.b16 %v238
    %v271 = vunpack.c.l.b16 %v239
    %v272 = vunpack.c.l.b16 %v240
    %v273 = vunpack.c.l.b16 %v241
    %v274 = vunpack.c.l.b16 %v242
    %v275 = vunpack.c.l.b16 %v243
    %v276 = vunpack.c.l.b16 %v244
    %v277 = vunpack.c.l.b16 %v245
    %v278 = vunpack.c.l.b16 %v246
    %v279 = vunpack.c.l.b16 %v247
    %v280 = vunpack.c.l.b16 %v248
    %v281 = vpack.c.b16 %v266, %v265
    %v282 = vpack.c.b16 %v268, %v267
    %v283 = vpack.c.b16 %v270, %v269
    %v284 = vpack.c.b16 %v272, %v271
    %v285 = vpack.c.b16 %v274, %v273
    %v286 = vpack.c.b16 %v276, %v275
    %v287 = vpack.c.b16 %v278, %v277
    %v288 = vpack.c.b16 %v280, %v279
    %297 = vmatprep.subr.bf16.mxu0 0
    %298 = vmatpush1.bf16.msra.mxu0 %v288
    %299 = vmatprep.subr.bf16.mxu0 0
    %300 = vmatpush1.bf16.msra.mxu0 %v287
    %301 = vmatprep.subr.bf16.mxu0 0
    %302 = vmatpush1.bf16.msra.mxu0 %v286
    %303 = vmatprep.subr.bf16.mxu0 0
    %304 = vmatpush1.bf16.msra.mxu0 %v285
    %305 = vmatprep.subr.bf16.mxu0 0
    %306 = vmatpush1.bf16.msra.mxu0 %v284
    %307 = vmatprep.subr.bf16.mxu0 0
    %308 = vmatpush1.bf16.msra.mxu0 %v283
    %309 = vmatprep.subr.bf16.mxu0 0
    %310 = vmatpush1.bf16.msra.mxu0 %v282
    %311 = vmatprep.subr.bf16.mxu0 0
    %312 = vmatpush1.bf16.msra.mxu0 %v281
    %313 = vmatprep.subr.bf16.mxu0 0
    %314 = vmatpush2.bf16.msra.mxu0 0
    %315 = vmatprep.subr.bf16.mxu0 0
    %316 = vmatpush2.bf16.msra.mxu0 0
    %317 = vmatprep.subr.bf16.mxu0 0
    %318 = vmatpush2.bf16.msra.mxu0 0
    %319 = vmatprep.subr.bf16.mxu0 0
    %320 = vmatpush2.bf16.msra.mxu0 0
    %321 = vmatprep.subr.bf16.mxu0 0
    %322 = vmatpush2.bf16.msra.mxu0 0
    %323 = vmatprep.subr.bf16.mxu0 0
    %324 = vmatpush2.bf16.msra.mxu0 0
    %325 = vmatprep.subr.bf16.mxu0 0
    %326 = vmatpush2.bf16.msra.mxu0 0
    %327 = vmatprep.subr.bf16.mxu0 0
    %328 = vmatpush2.bf16.msra.mxu0 0
    %329 = vmatprep.mubr.bf16.mxu0 0
    %330 = vmatmul.mubr.bf16.gmra.mxu0 %v231
    %v331 = vpop.f32.mrf.mxu0
    %v332 = vadd.f32 0.0, %v331
    %v333 = vpop.f32.mrf.mxu0
    %v334 = vpop.f32.mrf.mxu0
    %v335 = vpop.f32.mrf.mxu0
    %336 = vdwg.mxu0
    %v337 = vadd.f32 %v232, %v332
    %338 = vst [vmem:[#allocation2] sm:$0xff] %v337
    // Predicated region
    $region50: #{tpu_custom_call.1} parent=1 // pred_check
      %p339 = pneg %p87
    $region51: #{tpu_custom_call.1} parent=1 // pred_check_branch
      %341 = sbr.rel (%p339) target = $region53
    $region52: #{tpu_custom_call.1} parent=1 // pred_region
      %v342 = vld [vmem:[#allocation2] sm:$0xff]
      %v343 = vrot.slane %v342, 4
      %v344 = vadd.f32 %v342, %v343
      %v345 = vrot.slane %v344, 2
      %v346 = vadd.f32 %v344, %v345
      %v347 = vrot.slane %v346, 1
      %v348 = vadd.f32 %v346, %v347
      %v349 = vmul.f32 %v348, 0.125
      %v350 = vsub.f32 %v342, %v349
      %v351 = vmul.f32 %v350, %v350
      %v352 = vrot.slane %v351, 4
      %v353 = vadd.f32 %v351, %v352
      %v354 = vrot.slane %v353, 2
      %v355 = vadd.f32 %v353, %v354
      %v356 = vrot.slane %v355, 1
      %v357 = vadd.f32 %v355, %v356
      %v358 = vmul.f32 %v357, 0.125
      %v359 = vld [vmem:[#allocation11] sm:$0x1]
      %v360 = vadd.f32 %v358, 1e-05
      %v361 = vrsqrt.pop %v360
      %v362 = vmul.f32 %v359, %v361
      %v363 = vld [vmem:[#allocation11 + $0x1] sm:$0x1]
      %v364 = vmul.f32 %v349, %v362
      %v365 = vsub.f32 %v363, %v364
      %v366 = vlaneseq
      %v367 = vshrl.u32 %v366, 7
      %v368 = vsub.s32 0, %v367
      %v369 = vrot.slane %v362, %v368
      %v370 = vmul.f32 %v342, %v369
      %v371 = vlaneseq
      %v372 = vshrl.u32 %v371, 7
      %v373 = vsub.s32 0, %v372
      %v374 = vrot.slane %v365, %v373
      %v375 = vadd.f32 %v370, %v374
      %v376 = vld [vmem:[%s5] sm:$0xff]
      %v377 = vadd.f32 %v375, %v376
      %v378 = vmax.f32 %v377, 0.0
      %379 = vst [vmem:[#allocation12] sm:$0xff] %v378
    $region53: #{tpu_custom_call.1} parent=1 // pred_fallthru
      _
    // Predicated region
    $region54: #{tpu_custom_call.1} parent=1 // pred_check
      _
    $region55: #{tpu_custom_call.1} parent=1 // pred_check_branch
      %381 = sbr.rel (0) target = $region57
    $region56: #{tpu_custom_call.1} parent=1 // pred_region
      %s383 = ssub.s32 128, 128
      %384 = vsyncadd [#allocation5], %s383
      %s386 = sshll.u32 [#allocation12], 4
      %s387 = int_to_ptr.vmem [resolvable:$true] %s386
      %389 = dma.vmem_to_hbm [thread:$0]  %s387, 128, %s6, [#allocation5]
    $region57: #{tpu_custom_call.1} parent=1 // pred_fallthru
      _
    // Predicated region
    $region58: #{tpu_custom_call.1} parent=1 // pred_check
      _
    $region59: #{tpu_custom_call.1} parent=1 // pred_check_branch
      %391 = sbr.rel (0) target = $region61
    $region60: #{tpu_custom_call.1} parent=1 // pred_region
      %392 = dma.done [#allocation5], 128
    $region61: #{tpu_custom_call.1} parent=1 // pred_fallthru
      _
    %393 = vsyncpa [#allocation4], 1
    %394 = vsyncpa [#allocation7], 1
    %395 = vsyncpa [#allocation10], 1
    %396 = vsyncpa [#allocation5], 1

</llo_original>
